<compile_context>
chip_gen: v7x
topology: tpu7x:2x2x1
jax: 0.10.0
libtpu: 0.0.40
codegen_flags: <defaults>
</compile_context>

<pallas_src>
import functools

import jax
import jax.numpy as jnp
from jax.experimental import pallas as pl
from jax.experimental.pallas import tpu as pltpu


def _rmsnorm_kernel(x_ref, w_ref, o_ref, *, eps):
    # x_ref: (tile_rows, hidden), w_ref: (1, hidden)
    x = x_ref[...]
    xf = x.astype(jnp.float32)
    # f32 accumulation over the hidden dim (PyTorch parity for half inputs).
    variance = jnp.mean(xf * xf, axis=-1, keepdims=True)
    inv = jax.lax.rsqrt(variance + jnp.float32(eps)).astype(x.dtype)
    o_ref[...] = (w_ref[...] * (x * inv)).astype(o_ref.dtype)


def _vmem_budget():
    """Derive (vmem_limit_bytes, target_block_bytes) from the chip's VMEM.

    v7x: 64 MiB/TC -> limit 48 MiB, ~8 MiB blocks.
    v5e/v6e: 128 MiB -> limit 96 MiB, ~16 MiB blocks.
    Unknown/failed query -> conservative v7x sizing (safe everywhere).
    """
    try:
        cap = int(pltpu.get_tpu_info().vmem_capacity_bytes)
    except Exception:
        cap = 64 << 20
    vmem_limit = min(96 << 20, max(32 << 20, cap - (16 << 20)))
    # 2 input buffers + 2 output buffers + weight + compiler scratch headroom.
    target_block = vmem_limit // 6
    return vmem_limit, target_block


def _pick_tile_rows(rows, hidden, dtype, target_block_bytes,
                    target_steps=8, min_block_bytes=1 << 20):
    """Pick a row tile:
      * aligned to the dtype sublane packing (8 f32 / 16 bf16 / 32 int8),
      * at most ~target_block_bytes per block,
      * small enough that the row grid keeps >= target_steps steps when the
        data is large enough (pipeline overlap + v7x 2-TC load balance),
      * but never so small that a block drops below ~min_block_bytes
        (keeps the ~0.35 us/step pipeline overhead <2%)."""
    itemsize = jnp.dtype(dtype).itemsize
    pack = 8 * max(1, 4 // itemsize)          # 8 f32, 16 bf16, 32 int8/fp8
    row_bytes = hidden * itemsize

    # Largest tile within the per-block byte budget.
    tile = max(pack, (target_block_bytes // row_bytes) // pack * pack)

    # Never larger than the (pack-rounded) row count.
    rows_padded = pl.cdiv(rows, pack) * pack
    tile = min(tile, rows_padded)

    # Aim for >= target_steps grid steps, but keep blocks >= min_block_bytes.
    step_cap = max(pack, pl.cdiv(pl.cdiv(rows, target_steps), pack) * pack)
    min_tile = max(pack, pl.cdiv(pl.cdiv(min_block_bytes, row_bytes), pack) * pack)
    tile = min(tile, max(step_cap, min_tile))
    tile = min(tile, rows_padded)
    return int(max(tile, pack))


def llama_rmsnorm_wrapper(hidden_states, weight, variance_epsilon, scale,
                          *, tile_rows=None):
    """Pallas implementation of LlamaRMSNormWrapper.forward.

    hidden_states: (batch, seq, hidden) array.
    weight:        (hidden,) array.
    """
    # __init__ behavior: eps /= scale**2 then cast to half precision.
    eps_scaled = float(jnp.asarray(variance_epsilon / (scale ** 2), jnp.float16))

    b, s, h = hidden_states.shape
    rows = b * s
    x2d = hidden_states.reshape(rows, h)
    w2d = weight.reshape(1, h)

    vmem_limit_bytes, target_block_bytes = _vmem_budget()
    if tile_rows is None:
        tile_rows = _pick_tile_rows(rows, h, hidden_states.dtype,
                                    target_block_bytes)

    grid = (pl.cdiv(rows, tile_rows),)

    out2d = pl.pallas_call(
        functools.partial(_rmsnorm_kernel, eps=eps_scaled),
        out_shape=jax.ShapeDtypeStruct((rows, h), hidden_states.dtype),
        grid_spec=pltpu.PrefetchScalarGridSpec(
            num_scalar_prefetch=0,
            grid=grid,
            in_specs=[
                pl.BlockSpec((tile_rows, h), lambda i: (i, 0)),
                pl.BlockSpec((1, h), lambda i: (0, 0)),   # weight resident across steps
            ],
            out_specs=pl.BlockSpec((tile_rows, h), lambda i: (i, 0)),
        ),
        compiler_params=pltpu.CompilerParams(
            # TODO(synk): confirm on v7x xprof that this single parallel axis
            # actually shards across both TensorCores; if not, switch to an
            # explicit leading core axis / pltpu.CORE_PARALLEL.
            dimension_semantics=("parallel",),
            vmem_limit_bytes=vmem_limit_bytes,
        ),
    )(x2d, w2d)

    return out2d.reshape(b, s, h)


def _reference(hidden_states, weight, variance_epsilon, scale):
    eps_scaled = float(jnp.asarray(variance_epsilon / (scale ** 2), jnp.float16))
    xf = hidden_states.astype(jnp.float32)
    variance = jnp.mean(xf * xf, axis=-1, keepdims=True)
    inv = jax.lax.rsqrt(variance + jnp.float32(eps_scaled)).astype(hidden_states.dtype)
    return weight * (hidden_states * inv)


if __name__ == "__main__":
    key = jax.random.PRNGKey(0)
    k_x, k_w = jax.random.split(key)

    batch, seq, hidden = 2, 8, 128
    x = jax.random.normal(k_x, (batch, seq, hidden), dtype=jnp.float32)
    # LlamaRMSNorm initializes weight to ones; add a small perturbation so the
    # final multiply is actually exercised.
    weight = jnp.ones((hidden,), jnp.float32) + 0.01 * jax.random.normal(
        k_w, (hidden,), dtype=jnp.float32)

    variance_epsilon = 1e-6
    scale = 2.0

    out = llama_rmsnorm_wrapper(x, weight, variance_epsilon, scale)
    out = jax.block_until_ready(out)

    ref = _reference(x, weight, variance_epsilon, scale)
    assert out.shape == x.shape and out.dtype == x.dtype
    assert jnp.allclose(out, ref, atol=1e-5, rtol=1e-5)

    print("KERNEL_OK")
</pallas_src>

<mosaic_0001>
module attributes {stable_mosaic.version = 11 : i64} {
  func.func @_rmsnorm_kernel(%arg0: i32, %arg1: memref<16x128xf32, #tpu.memory_space<vmem>>, %arg2: memref<1x128xf32, #tpu.memory_space<vmem>>, %arg3: memref<16x128xf32, #tpu.memory_space<vmem>>) attributes {dimension_semantics = [#tpu.dimension_semantics<parallel>], iteration_bounds = array<i64: 1>, scalar_prefetch = 0 : i64, scratch_operands = 0 : i64, tpu.core_type = #tpu.core_type<tc>, window_params = [{transform_indices = @transform_0, window_bounds = array<i64: 16, 128>}, {pipeline_mode = #tpu.pipeline_mode<synchronous>, transform_indices = @transform_1, window_bounds = array<i64: 1, 128>}, {transform_indices = @transform_2, window_bounds = array<i64: 16, 128>}]} {
    %c0 = arith.constant 0 : index
    %c0_0 = arith.constant 0 : index
    %0 = vector.load %arg1[%c0, %c0_0] : memref<16x128xf32, #tpu.memory_space<vmem>>, vector<16x128xf32>
    %1 = arith.mulf %0, %0 : vector<16x128xf32>
    %cst = arith.constant dense<0.000000e+00> : vector<16xf32>
    %2 = vector.multi_reduction <add>, %1, %cst [1] : vector<16x128xf32> to vector<16xf32>
    %3 = vector.shape_cast %2 : vector<16xf32> to vector<16x1xf32>
    %cst_1 = arith.constant 1.280000e+02 : f32
    %4 = vector.broadcast %cst_1 : f32 to vector<16x1xf32>
    %5 = arith.divf %3, %4 : vector<16x1xf32>
    %cst_2 = arith.constant 2.38418579E-7 : f32
    %6 = vector.broadcast %cst_2 : f32 to vector<16x1xf32>
    %7 = arith.addf %5, %6 : vector<16x1xf32>
    %8 = math.rsqrt %7 : vector<16x1xf32>
    %c0_3 = arith.constant 0 : index
    %c0_4 = arith.constant 0 : index
    %9 = vector.load %arg2[%c0_3, %c0_4] : memref<1x128xf32, #tpu.memory_space<vmem>>, vector<1x128xf32>
    %10 = vector.broadcast %8 : vector<16x1xf32> to vector<16x128xf32>
    %11 = arith.mulf %0, %10 : vector<16x128xf32>
    %12 = vector.broadcast %9 : vector<1x128xf32> to vector<16x128xf32>
    %13 = arith.mulf %12, %11 : vector<16x128xf32>
    %c0_5 = arith.constant 0 : index
    %c0_6 = arith.constant 0 : index
    %14 = vector.load %arg3[%c0_5, %c0_6] : memref<16x128xf32, #tpu.memory_space<vmem>>, vector<16x128xf32>
    tpu.vector_store %arg3[%c0_5, %c0_6], %13 {strides = array<i32>} : memref<16x128xf32, #tpu.memory_space<vmem>>, vector<16x128xf32>,
    return
  }
  func.func @transform_0(%arg0: i32) -> (i32, i32) {
    %c0_i32 = arith.constant 0 : i32
    %c0_i32_0 = arith.constant 0 : i32
    return %arg0, %c0_i32 : i32, i32
  }
  func.func @transform_1(%arg0: i32) -> (i32, i32) {
    %c0_i32 = arith.constant 0 : i32
    %c0_i32_0 = arith.constant 0 : i32
    %c0_i32_1 = arith.constant 0 : i32
    return %c0_i32, %c0_i32_0 : i32, i32
  }
  func.func @transform_2(%arg0: i32) -> (i32, i32) {
    %c0_i32 = arith.constant 0 : i32
    %c0_i32_0 = arith.constant 0 : i32
    return %arg0, %c0_i32 : i32, i32
  }
}

</mosaic_0001>

<llo_original>
// kernel: tpu_custom_call.1
$region0: #{tpu_custom_call.1}
  #allocation0 [shape = 'u32[]', space=smem, size = 0x4, offset = 0x4, fixed_abs, tag = 'smem constant byte address 0x4 - core index']
  #allocation1 [shape = 'u32[144,128]{1,0:T(1,128)}', space=vmem, size = 0x12000, scoped, tag = 'internal scratch']
  %s0 = inlined_call_operand.hbm [shape: f32[16,128], index: 0, kind: input, shape index: {}]
  %s1 = inlined_call_operand.vmem [shape: f32[1,128], index: 1, kind: input, shape index: {}]
  %s2 = inlined_call_operand.hbm [shape: f32[16,128], index: 2, kind: output, shape index: {}]
  %s3 = sld [smem:[#allocation0]]
  $region22: #{tpu_custom_call.1} parent=0
    _
  %s5 = ssub.s32 1, %s3
  %s6 = scalar_select 0, %s5, %s3
  $region1: #{tpu_custom_call.1} parent=0
    #allocation2 [shape = 'u8[8192]{0}', space=vmem, size = 0x2000, scoped, tag = 'input window, operand 0, single buffered']
    #allocation3 [shape = 's32[1]{0}', space=sflag, size = 0x4, scoped, tag = 'scoped memory for tpu_custom_call.1']
    #allocation4 [shape = 's32[1]{0}', space=sflag, size = 0x4, scoped, tag = 'scoped memory for tpu_custom_call.1']
    #allocation5 [shape = 'u8[8192]{0}', space=vmem, size = 0x2000, scoped, tag = 'output window, operand 0, single buffered']
    %7 = vsyncpa [#allocation3], 0
    %8 = vsyncpa [#allocation4], 0
    // Predicated region
    $region2: #{tpu_custom_call.1} parent=1 // pred_check
      _
    $region3: #{tpu_custom_call.1} parent=1 // pred_check_branch
      %10 = sbr.rel (0) target = $region5
    $region4: #{tpu_custom_call.1} parent=1 // pred_region
      %s12 = ssub.s32 256, 256
      %13 = vsyncadd [#allocation3], %s12
      %s14 = sshll.u32 [#allocation2], 4
      %s15 = int_to_ptr.vmem [resolvable:$true] %s14
      %20 = dma.hbm_to_vmem [thread:$0]  %s0, 256, %s15, [#allocation3], 128, 128, 8
    $region5: #{tpu_custom_call.1} parent=1 // pred_fallthru
      _
    // Predicated region
    $region6: #{tpu_custom_call.1} parent=1 // pred_check
      _
    $region7: #{tpu_custom_call.1} parent=1 // pred_check_branch
      %22 = sbr.rel (0) target = $region9
    $region8: #{tpu_custom_call.1} parent=1 // pred_region
      _
    $region9: #{tpu_custom_call.1} parent=1 // pred_fallthru
      _
    // Predicated region
    $region10: #{tpu_custom_call.1} parent=1 // pred_check
      _
    $region11: #{tpu_custom_call.1} parent=1 // pred_check_branch
      %24 = sbr.rel (0) target = $region13
    $region12: #{tpu_custom_call.1} parent=1 // pred_region
      %25 = dma.done [#allocation3], 256
    $region13: #{tpu_custom_call.1} parent=1 // pred_fallthru
      _
    %v26 = vld [vmem:[#allocation2] sm:$0xff]
    %v27 = vld [vmem:[#allocation2 + $0x8] sm:$0xff]
    %v28 = vmul.f32 %v26, %v26
    %v29 = vmul.f32 %v27, %v27
    %30 = vadd.xlane.f32.xlu0 %v28
    %v31 = vpop.xlane.xlu0 %30
    %32 = vadd.xlane.f32.xlu0 %v29
    %v33 = vpop.xlane.xlu0 %32
    %v34 = vrcp.pop 128.0
    %v35 = vmul.f32 %v31, %v34
    %v36 = vmul.f32 %v33, %v34
    %v37 = vadd.f32 %v35, 2.3841858e-07
    %v38 = vadd.f32 %v36, 2.3841858e-07
    %v39 = vrsqrt.pop %v37
    %v40 = vrsqrt.pop %v38
    %v41 = vld [vmem:[%s1] sm:$0x1]
    %v42 = vmul.f32 %v26, %v39
    %v43 = vmul.f32 %v27, %v40
    %v45 = vlaneseq
    %v46 = vshrl.u32 %v45, 7
    %v47 = vsub.s32 0, %v46
    %v48 = vrot.slane %v41, %v47
    %v50 = vmul.f32 %v48, %v42
    %v51 = vmul.f32 %v48, %v43
    %52 = vst [vmem:[#allocation5] sm:$0xff] %v50
    %53 = vst [vmem:[#allocation5 + $0x8] sm:$0xff] %v51
    // Predicated region
    $region14: #{tpu_custom_call.1} parent=1 // pred_check
      _
    $region15: #{tpu_custom_call.1} parent=1 // pred_check_branch
      %55 = sbr.rel (0) target = $region17
    $region16: #{tpu_custom_call.1} parent=1 // pred_region
      %s57 = ssub.s32 256, 256
      %58 = vsyncadd [#allocation4], %s57
      %s59 = sshll.u32 [#allocation5], 4
      %s60 = int_to_ptr.vmem [resolvable:$true] %s59
      %65 = dma.vmem_to_hbm [thread:$0]  %s60, 256, %s2, [#allocation4], 128, 128, 8
    $region17: #{tpu_custom_call.1} parent=1 // pred_fallthru
      _
    // Predicated region
    $region18: #{tpu_custom_call.1} parent=1 // pred_check
      _
    $region19: #{tpu_custom_call.1} parent=1 // pred_check_branch
      %67 = sbr.rel (0) target = $region21
    $region20: #{tpu_custom_call.1} parent=1 // pred_region
      %68 = dma.done [#allocation4], 256
    $region21: #{tpu_custom_call.1} parent=1 // pred_fallthru
      _
    %69 = vsyncpa [#allocation3], 1
    %70 = vsyncpa [#allocation4], 1

</llo_original>
